<compile_context>
chip_gen: v7x
topology: tpu7x:2x2x1
jax: 0.10.0
libtpu: 0.0.40
codegen_flags: <defaults>
</compile_context>

<pallas_src>
import jax
import jax.numpy as jnp
from jax.experimental import pallas as pl
from jax.experimental.pallas import tpu as pltpu

BN_EPS = 1e-5


def mlp_decoder_kernel(x_ref, w1_ref, gamma_ref, beta_ref, w2_ref, b2_ref, out_ref):
    """Fused: h = x@W1 ; BatchNorm1d(h) over batch ; gamma/beta ; ReLU ; out = h@W2 + b2."""
    # First Linear.  b1 omitted: (x@W1+b1) - mean(x@W1+b1) == x@W1 - mean(x@W1),
    # so it is mathematically absorbed by the training-mode BN that follows.
    h = jnp.dot(x_ref[...], w1_ref[...], preferred_element_type=jnp.float32)

    # BatchNorm1d, training-mode semantics: batch statistics, biased variance.
    mean = jnp.mean(h, axis=0, keepdims=True)
    var = jnp.mean((h - mean) ** 2, axis=0, keepdims=True)
    h = (h - mean) * jax.lax.rsqrt(var + BN_EPS)
    h = h * gamma_ref[...] + beta_ref[...]

    # ReLU.
    h = jnp.maximum(h, 0.0)

    # Second Linear: feed the MXU in the weight dtype (bf16 when requested),
    # accumulate in f32, add bias once, store.
    out = jnp.dot(h.astype(w2_ref.dtype), w2_ref[...],
                  preferred_element_type=jnp.float32)
    out_ref[...] = (out + b2_ref[...]).astype(out_ref.dtype)


def mlp_decoder_forward(x, w1, b1, gamma, beta, w2, b2, *, num_points,
                        compute_dtype=jnp.bfloat16):
    """x: (B, emb_dim).  w1: (emb_dim, H).  w2: (H, 3*num_points).  Returns (B, 3, num_points).

    b1 is accepted for API parity with the PyTorch module but is not passed to the
    kernel: with use_bn=True (module default) it is exactly cancelled by the batch
    mean subtraction.  compute_dtype controls the dtype of the MXU operands
    (weights + activations); accumulation is always f32.
    """
    del b1  # cancelled by training-mode BatchNorm; see kernel docstring.

    B, E = x.shape
    H = w1.shape[1]
    OUT = w2.shape[1]
    assert OUT == 3 * num_points

    x_c = x.astype(compute_dtype)
    w1_c = w1.astype(compute_dtype)
    w2_c = w2.astype(compute_dtype)
    gamma_2d = gamma.reshape(1, H).astype(jnp.float32)
    beta_2d = beta.reshape(1, H).astype(jnp.float32)
    b2_2d = b2.reshape(1, OUT).astype(jnp.float32)

    vmem = pl.BlockSpec(memory_space=pltpu.MemorySpace.VMEM)

    out = pl.pallas_call(
        mlp_decoder_kernel,
        out_shape=jax.ShapeDtypeStruct((B, OUT), x.dtype),
        in_specs=[vmem, vmem, vmem, vmem, vmem, vmem],
        out_specs=vmem,
    )(x_c, w1_c, gamma_2d, beta_2d, w2_c, b2_2d)

    return out.reshape(B, 3, num_points)


def reference_forward(x, w1, b1, gamma, beta, w2, b2, *, num_points):
    """Pure-JAX f32 reference matching the PyTorch module (use_bn=True, training mode)."""
    h = x @ w1 + b1
    mean = jnp.mean(h, axis=0, keepdims=True)
    var = jnp.mean((h - mean) ** 2, axis=0, keepdims=True)
    h = (h - mean) / jnp.sqrt(var + BN_EPS) * gamma + beta
    h = jnp.maximum(h, 0.0)
    out = h @ w2 + b2
    return out.reshape(-1, 3, num_points)


if __name__ == "__main__":
    # Small shapes consistent with the module: hidden width stays 1024
    # (hardcoded inside MLPDecoder); emb_dim / num_points kept small.
    B = 8
    EMB_DIM = 32
    HIDDEN = 1024
    NUM_POINTS = 64
    OUT_DIM = 3 * NUM_POINTS

    key = jax.random.PRNGKey(0)
    kx, kw1, kb1, kw2, kb2 = jax.random.split(key, 5)

    x = jax.random.normal(kx, (B, EMB_DIM), dtype=jnp.float32)

    # Deterministic parameter init (torch-Linear-style uniform bounds), pre-transposed
    # to (in_features, out_features) so the kernel does row-major matmuls.
    bound1 = 1.0 / (EMB_DIM ** 0.5)
    w1 = jax.random.uniform(kw1, (EMB_DIM, HIDDEN), jnp.float32, -bound1, bound1)
    b1 = jax.random.uniform(kb1, (HIDDEN,), jnp.float32, -bound1, bound1)
    gamma = jnp.ones((HIDDEN,), jnp.float32)   # BatchNorm1d default weight
    beta = jnp.zeros((HIDDEN,), jnp.float32)   # BatchNorm1d default bias
    bound2 = 1.0 / (HIDDEN ** 0.5)
    w2 = jax.random.uniform(kw2, (HIDDEN, OUT_DIM), jnp.float32, -bound2, bound2)
    b2 = jax.random.uniform(kb2, (OUT_DIM,), jnp.float32, -bound2, bound2)

    ref = reference_forward(x, w1, b1, gamma, beta, w2, b2, num_points=NUM_POINTS)

    # 1) f32 compute path: tight check (also validates that dropping b1 is exact).
    out_f32 = mlp_decoder_forward(x, w1, b1, gamma, beta, w2, b2,
                                  num_points=NUM_POINTS, compute_dtype=jnp.float32)
    out_f32 = jax.block_until_ready(out_f32)
    assert out_f32.shape == (B, 3, NUM_POINTS), out_f32.shape
    assert jnp.allclose(out_f32, ref, rtol=1e-4, atol=1e-4), \
        float(jnp.max(jnp.abs(out_f32 - ref)))

    # 2) bf16 compute path (the perf configuration): relaxed check vs f32 reference.
    out_bf16 = mlp_decoder_forward(x, w1, b1, gamma, beta, w2, b2,
                                   num_points=NUM_POINTS, compute_dtype=jnp.bfloat16)
    out_bf16 = jax.block_until_ready(out_bf16)
    assert out_bf16.shape == (B, 3, NUM_POINTS), out_bf16.shape
    assert jnp.allclose(out_bf16, ref, rtol=5e-2, atol=5e-2), \
        float(jnp.max(jnp.abs(out_bf16 - ref)))

    print("KERNEL_OK")
</pallas_src>

<mosaic_0001>
module attributes {stable_mosaic.version = 11 : i64} {
  func.func @mlp_decoder_kernel(%arg0: memref<8x32xf32, #tpu.memory_space<vmem>>, %arg1: memref<32x1024xf32, #tpu.memory_space<vmem>>, %arg2: memref<1x1024xf32, #tpu.memory_space<vmem>>, %arg3: memref<1x1024xf32, #tpu.memory_space<vmem>>, %arg4: memref<1024x192xf32, #tpu.memory_space<vmem>>, %arg5: memref<1x192xf32, #tpu.memory_space<vmem>>, %arg6: memref<8x192xf32, #tpu.memory_space<vmem>>) attributes {dimension_semantics = [], scalar_prefetch = 0 : i64, scratch_operands = 0 : i64, tpu.core_type = #tpu.core_type<tc>} {
    %c0 = arith.constant 0 : index
    %c0_0 = arith.constant 0 : index
    %0 = vector.load %arg0[%c0, %c0_0] : memref<8x32xf32, #tpu.memory_space<vmem>>, vector<8x32xf32>
    %c0_1 = arith.constant 0 : index
    %c0_2 = arith.constant 0 : index
    %1 = vector.load %arg1[%c0_1, %c0_2] : memref<32x1024xf32, #tpu.memory_space<vmem>>, vector<32x1024xf32>
    %cst = arith.constant dense<0.000000e+00> : vector<8x1024xf32>
    %2 = tpu.matmul %0, %1, %cst {dimension_numbers = #tpu.dot_dimension_numbers<[1], [0], [0], [1], [0, 0, 1, 1], [], []>} : vector<8x32xf32>, vector<32x1024xf32>, vector<8x1024xf32> -> vector<8x1024xf32>
    %cst_3 = arith.constant dense<0.000000e+00> : vector<1024xf32>
    %3 = vector.multi_reduction <add>, %2, %cst_3 [0] : vector<8x1024xf32> to vector<1024xf32>
    %4 = vector.shape_cast %3 : vector<1024xf32> to vector<1x1024xf32>
    %cst_4 = arith.constant 8.000000e+00 : f32
    %5 = vector.broadcast %cst_4 : f32 to vector<1x1024xf32>
    %6 = arith.divf %4, %5 : vector<1x1024xf32>
    %7 = vector.broadcast %6 : vector<1x1024xf32> to vector<8x1024xf32>
    %8 = arith.subf %2, %7 : vector<8x1024xf32>
    %9 = arith.mulf %8, %8 : vector<8x1024xf32>
    %cst_5 = arith.constant dense<0.000000e+00> : vector<1024xf32>
    %10 = vector.multi_reduction <add>, %9, %cst_5 [0] : vector<8x1024xf32> to vector<1024xf32>
    %11 = vector.shape_cast %10 : vector<1024xf32> to vector<1x1024xf32>
    %cst_6 = arith.constant 8.000000e+00 : f32
    %12 = vector.broadcast %cst_6 : f32 to vector<1x1024xf32>
    %13 = arith.divf %11, %12 : vector<1x1024xf32>
    %14 = vector.broadcast %6 : vector<1x1024xf32> to vector<8x1024xf32>
    %15 = arith.subf %2, %14 : vector<8x1024xf32>
    %cst_7 = arith.constant 9.99999974E-6 : f32
    %16 = vector.broadcast %cst_7 : f32 to vector<1x1024xf32>
    %17 = arith.addf %13, %16 : vector<1x1024xf32>
    %18 = math.rsqrt %17 : vector<1x1024xf32>
    %19 = vector.broadcast %18 : vector<1x1024xf32> to vector<8x1024xf32>
    %20 = arith.mulf %15, %19 : vector<8x1024xf32>
    %c0_8 = arith.constant 0 : index
    %c0_9 = arith.constant 0 : index
    %21 = vector.load %arg2[%c0_8, %c0_9] : memref<1x1024xf32, #tpu.memory_space<vmem>>, vector<1x1024xf32>
    %22 = vector.broadcast %21 : vector<1x1024xf32> to vector<8x1024xf32>
    %23 = arith.mulf %20, %22 : vector<8x1024xf32>
    %c0_10 = arith.constant 0 : index
    %c0_11 = arith.constant 0 : index
    %24 = vector.load %arg3[%c0_10, %c0_11] : memref<1x1024xf32, #tpu.memory_space<vmem>>, vector<1x1024xf32>
    %25 = vector.broadcast %24 : vector<1x1024xf32> to vector<8x1024xf32>
    %26 = arith.addf %23, %25 : vector<8x1024xf32>
    %cst_12 = arith.constant 0.000000e+00 : f32
    %27 = vector.broadcast %cst_12 : f32 to vector<8x1024xf32>
    %28 = arith.maximumf %26, %27 : vector<8x1024xf32>
    %c0_13 = arith.constant 0 : index
    %c0_14 = arith.constant 0 : index
    %29 = vector.load %arg4[%c0_13, %c0_14] : memref<1024x192xf32, #tpu.memory_space<vmem>>, vector<1024x192xf32>
    %cst_15 = arith.constant dense<0.000000e+00> : vector<8x192xf32>
    %30 = tpu.matmul %28, %29, %cst_15 {dimension_numbers = #tpu.dot_dimension_numbers<[1], [0], [0], [1], [0, 0, 1, 1], [], []>} : vector<8x1024xf32>, vector<1024x192xf32>, vector<8x192xf32> -> vector<8x192xf32>
    %c0_16 = arith.constant 0 : index
    %c0_17 = arith.constant 0 : index
    %31 = vector.load %arg5[%c0_16, %c0_17] : memref<1x192xf32, #tpu.memory_space<vmem>>, vector<1x192xf32>
    %32 = vector.broadcast %31 : vector<1x192xf32> to vector<8x192xf32>
    %33 = arith.addf %30, %32 : vector<8x192xf32>
    %c0_18 = arith.constant 0 : index
    %c0_19 = arith.constant 0 : index
    %34 = vector.load %arg6[%c0_18, %c0_19] : memref<8x192xf32, #tpu.memory_space<vmem>>, vector<8x192xf32>
    tpu.vector_store %arg6[%c0_18, %c0_19], %33 {strides = array<i32>} : memref<8x192xf32, #tpu.memory_space<vmem>>, vector<8x192xf32>,
    return
  }
}

</mosaic_0001>

<llo_original>
// kernel: tpu_custom_call.1
$region0: #{tpu_custom_call.1}
  #allocation0 [shape = 'u32[]', space=smem, size = 0x4, offset = 0x4, fixed_abs, tag = 'smem constant byte address 0x4 - core index']
  #allocation1 [shape = 'u32[144,128]{1,0:T(1,128)}', space=vmem, size = 0x12000, scoped, tag = 'internal scratch']
  %s0 = inlined_call_operand.vmem [shape: f32[8,32], index: 0, kind: input, shape index: {}]
  %s1 = inlined_call_operand.vmem [shape: f32[32,1024], index: 1, kind: input, shape index: {}]
  %s2 = inlined_call_operand.vmem [shape: f32[1,1024], index: 2, kind: input, shape index: {}]
  %s3 = inlined_call_operand.vmem [shape: f32[1,1024], index: 3, kind: input, shape index: {}]
  %s4 = inlined_call_operand.vmem [shape: f32[1024,192], index: 4, kind: input, shape index: {}]
  %s5 = inlined_call_operand.vmem [shape: f32[1,192], index: 5, kind: input, shape index: {}]
  %s6 = inlined_call_operand.hbm [shape: f32[8,192], index: 6, kind: output, shape index: {}]
  %s7 = sld [smem:[#allocation0]]
  $region34: #{tpu_custom_call.1} parent=0
    _
  %s9 = ssub.s32 1, %s7
  %s10 = scalar_select 0, %s9, %s7
  $region1: #{tpu_custom_call.1} parent=0
    #allocation2 [shape = 'u8[8192]{0}', space=vmem, size = 0x2000, scoped, tag = 'output window, operand 0, single buffered']
    #allocation3 [shape = 's32[1]{0}', space=sflag, size = 0x4, scoped, tag = 'scoped memory for tpu_custom_call.1']
    %11 = vsyncpa [#allocation3], 0
    // Predicated region
    $region2: #{tpu_custom_call.1} parent=1 // pred_check
      _
    $region3: #{tpu_custom_call.1} parent=1 // pred_check_branch
      %13 = sbr.rel (0) target = $region5
    $region4: #{tpu_custom_call.1} parent=1 // pred_region
      _
    $region5: #{tpu_custom_call.1} parent=1 // pred_fallthru
      _
    // Predicated region
    $region6: #{tpu_custom_call.1} parent=1 // pred_check
      _
    $region7: #{tpu_custom_call.1} parent=1 // pred_check_branch
      %15 = sbr.rel (0) target = $region9
    $region8: #{tpu_custom_call.1} parent=1 // pred_region
      _
    $region9: #{tpu_custom_call.1} parent=1 // pred_fallthru
      _
    // Predicated region
    $region10: #{tpu_custom_call.1} parent=1 // pred_check
      _
    $region11: #{tpu_custom_call.1} parent=1 // pred_check_branch
      %17 = sbr.rel (0) target = $region13
    $region12: #{tpu_custom_call.1} parent=1 // pred_region
      _
    $region13: #{tpu_custom_call.1} parent=1 // pred_fallthru
      _
    // Predicated region
    $region14: #{tpu_custom_call.1} parent=1 // pred_check
      _
    $region15: #{tpu_custom_call.1} parent=1 // pred_check_branch
      %19 = sbr.rel (0) target = $region17
    $region16: #{tpu_custom_call.1} parent=1 // pred_region
      _
    $region17: #{tpu_custom_call.1} parent=1 // pred_fallthru
      _
    // Predicated region
    $region18: #{tpu_custom_call.1} parent=1 // pred_check
      _
    $region19: #{tpu_custom_call.1} parent=1 // pred_check_branch
      %21 = sbr.rel (0) target = $region21
    $region20: #{tpu_custom_call.1} parent=1 // pred_region
      _
    $region21: #{tpu_custom_call.1} parent=1 // pred_fallthru
      _
    // Predicated region
    $region22: #{tpu_custom_call.1} parent=1 // pred_check
      _
    $region23: #{tpu_custom_call.1} parent=1 // pred_check_branch
      %23 = sbr.rel (0) target = $region25
    $region24: #{tpu_custom_call.1} parent=1 // pred_region
      _
    $region25: #{tpu_custom_call.1} parent=1 // pred_fallthru
      _
    %v24 = vld [vmem:[%s0] sm:$0xff]
    %v25 = vld [vmem:[%s1] sm:$0xff]
    %v26 = vld [vmem:[%s1 + $0x8] sm:$0xff]
    %v27 = vld [vmem:[%s1 + $0x10] sm:$0xff]
    %v28 = vld [vmem:[%s1 + $0x18] sm:$0xff]
    %v29 = vld [vmem:[%s1 + $0x20] sm:$0xff]
    %v30 = vld [vmem:[%s1 + $0x28] sm:$0xff]
    %v31 = vld [vmem:[%s1 + $0x30] sm:$0xff]
    %v32 = vld [vmem:[%s1 + $0x38] sm:$0xff]
    %v33 = vld [vmem:[%s1 + $0x40] sm:$0xff]
    %v34 = vld [vmem:[%s1 + $0x48] sm:$0xff]
    %v35 = vld [vmem:[%s1 + $0x50] sm:$0xff]
    %v36 = vld [vmem:[%s1 + $0x58] sm:$0xff]
    %v37 = vld [vmem:[%s1 + $0x60] sm:$0xff]
    %v38 = vld [vmem:[%s1 + $0x68] sm:$0xff]
    %v39 = vld [vmem:[%s1 + $0x70] sm:$0xff]
    %v40 = vld [vmem:[%s1 + $0x78] sm:$0xff]
    %v41 = vld [vmem:[%s1 + $0x80] sm:$0xff]
    %v42 = vld [vmem:[%s1 + $0x88] sm:$0xff]
    %v43 = vld [vmem:[%s1 + $0x90] sm:$0xff]
    %v44 = vld [vmem:[%s1 + $0x98] sm:$0xff]
    %v45 = vld [vmem:[%s1 + $0xa0] sm:$0xff]
    %v46 = vld [vmem:[%s1 + $0xa8] sm:$0xff]
    %v47 = vld [vmem:[%s1 + $0xb0] sm:$0xff]
    %v48 = vld [vmem:[%s1 + $0xb8] sm:$0xff]
    %v49 = vld [vmem:[%s1 + $0xc0] sm:$0xff]
    %v50 = vld [vmem:[%s1 + $0xc8] sm:$0xff]
    %v51 = vld [vmem:[%s1 + $0xd0] sm:$0xff]
    %v52 = vld [vmem:[%s1 + $0xd8] sm:$0xff]
    %v53 = vld [vmem:[%s1 + $0xe0] sm:$0xff]
    %v54 = vld [vmem:[%s1 + $0xe8] sm:$0xff]
    %v55 = vld [vmem:[%s1 + $0xf0] sm:$0xff]
    %v56 = vld [vmem:[%s1 + $0xf8] sm:$0xff]
    %vm57 = vcmask 261120
    %v59 = vsel %vm57, %v24, 0
    %61 = vmatprep.subr.mxu0 %v26
    %62 = vmatpush1.msra.mxu0 %v25
    %63 = vmatprep.subr.mxu0 %v34
    %64 = vmatpush1.msra.mxu0 %v33
    %65 = vmatprep.subr.mxu0 %v42
    %66 = vmatpush1.msra.mxu0 %v41
    %67 = vmatprep.subr.mxu0 %v50
    %68 = vmatpush1.msra.mxu0 %v49
    %69 = vmatprep.subr.mxu0 0.0
    %70 = vmatpush1.msra.mxu0 0.0
    %71 = vmatprep.subr.mxu0 0.0
    %72 = vmatpush1.msra.mxu0 0.0
    %73 = vmatprep.subr.mxu0 0.0
    %74 = vmatpush1.msra.mxu0 0.0
    %75 = vmatprep.subr.mxu0 0.0
    %76 = vmatpush1.msra.mxu0 0.0
    %77 = vmatprep.subr.mxu0 0.0
    %78 = vmatpush1.msra.mxu0 0.0
    %79 = vmatprep.subr.mxu0 0.0
    %80 = vmatpush1.msra.mxu0 0.0
    %81 = vmatprep.subr.mxu0 0.0
    %82 = vmatpush1.msra.mxu0 0.0
    %83 = vmatprep.subr.mxu0 0.0
    %84 = vmatpush1.msra.mxu0 0.0
    %85 = vmatprep.subr.mxu0 0.0
    %86 = vmatpush1.msra.mxu0 0.0
    %87 = vmatprep.subr.mxu0 0.0
    %88 = vmatpush1.msra.mxu0 0.0
    %89 = vmatprep.subr.mxu0 0.0
    %90 = vmatpush1.msra.mxu0 0.0
    %91 = vmatprep.subr.mxu0 0.0
    %92 = vmatpush1.msra.mxu0 0.0
    %93 = vmatprep.subr.mxu0 0.0
    %94 = vmatpush1.msra.mxu0 0.0
    %95 = vmatprep.subr.mxu0 0.0
    %96 = vmatpush1.msra.mxu0 0.0
    %97 = vmatprep.subr.mxu0 0.0
    %98 = vmatpush1.msra.mxu0 0.0
    %99 = vmatprep.subr.mxu0 0.0
    %100 = vmatpush1.msra.mxu0 0.0
    %101 = vmatprep.subr.mxu0 0.0
    %102 = vmatpush1.msra.mxu0 0.0
    %103 = vmatprep.subr.mxu0 0.0
    %104 = vmatpush1.msra.mxu0 0.0
    %105 = vmatprep.subr.mxu0 0.0
    %106 = vmatpush1.msra.mxu0 0.0
    %107 = vmatprep.subr.mxu0 0.0
    %108 = vmatpush1.msra.mxu0 0.0
    %109 = vmatprep.subr.mxu0 0.0
    %110 = vmatpush1.msra.mxu0 0.0
    %111 = vmatprep.subr.mxu0 0.0
    %112 = vmatpush1.msra.mxu0 0.0
    %113 = vmatprep.subr.mxu0 0.0
    %114 = vmatpush1.msra.mxu0 0.0
    %115 = vmatprep.subr.mxu0 0.0
    %116 = vmatpush1.msra.mxu0 0.0
    %117 = vmatprep.subr.mxu0 0.0
    %118 = vmatpush1.msra.mxu0 0.0
    %119 = vmatprep.subr.mxu0 0.0
    %120 = vmatpush1.msra.mxu0 0.0
    %121 = vmatprep.subr.mxu0 0.0
    %122 = vmatpush1.msra.mxu0 0.0
    %123 = vmatprep.subr.mxu0 0.0
    %124 = vmatpush1.msra.mxu0 0.0
    %125 = vmatprep.mubr.f32.mxu0 0.0
    %126 = vmatmul.mubr.f32.gmra.mrb[0].mxu0 %v59
    %v127 = vpop.f32.mrb[0].mxu0
    %v128 = vadd.f32 0.0, %v127
    %v129 = vpop.f32.mrb[0].mxu0
    %v130 = vadd.f32 0.0, %v129
    %131 = vdwg.mxu0
    %132 = vmatprep.subr.mxu0 %v28
    %133 = vmatpush1.msra.mxu0 %v27
    %134 = vmatprep.subr.mxu0 %v36
    %135 = vmatpush1.msra.mxu0 %v35
    %136 = vmatprep.subr.mxu0 %v44
    %137 = vmatpush1.msra.mxu0 %v43
    %138 = vmatprep.subr.mxu0 %v52
    %139 = vmatpush1.msra.mxu0 %v51
    %140 = vmatprep.subr.mxu0 0.0
    %141 = vmatpush1.msra.mxu0 0.0
    %142 = vmatprep.subr.mxu0 0.0
    %143 = vmatpush1.msra.mxu0 0.0
    %144 = vmatprep.subr.mxu0 0.0
    %145 = vmatpush1.msra.mxu0 0.0
    %146 = vmatprep.subr.mxu0 0.0
    %147 = vmatpush1.msra.mxu0 0.0
    %148 = vmatprep.subr.mxu0 0.0
    %149 = vmatpush1.msra.mxu0 0.0
    %150 = vmatprep.subr.mxu0 0.0
    %151 = vmatpush1.msra.mxu0 0.0
    %152 = vmatprep.subr.mxu0 0.0
    %153 = vmatpush1.msra.mxu0 0.0
    %154 = vmatprep.subr.mxu0 0.0
    %155 = vmatpush1.msra.mxu0 0.0
    %156 = vmatprep.subr.mxu0 0.0
    %157 = vmatpush1.msra.mxu0 0.0
    %158 = vmatprep.subr.mxu0 0.0
    %159 = vmatpush1.msra.mxu0 0.0
    %160 = vmatprep.subr.mxu0 0.0
    %161 = vmatpush1.msra.mxu0 0.0
    %162 = vmatprep.subr.mxu0 0.0
    %163 = vmatpush1.msra.mxu0 0.0
    %164 = vmatprep.subr.mxu0 0.0
    %165 = vmatpush1.msra.mxu0 0.0
    %166 = vmatprep.subr.mxu0 0.0
    %167 = vmatpush1.msra.mxu0 0.0
    %168 = vmatprep.subr.mxu0 0.0
    %169 = vmatpush1.msra.mxu0 0.0
    %170 = vmatprep.subr.mxu0 0.0
    %171 = vmatpush1.msra.mxu0 0.0
    %172 = vmatprep.subr.mxu0 0.0
    %173 = vmatpush1.msra.mxu0 0.0
    %174 = vmatprep.subr.mxu0 0.0
    %175 = vmatpush1.msra.mxu0 0.0
    %176 = vmatprep.subr.mxu0 0.0
    %177 = vmatpush1.msra.mxu0 0.0
    %178 = vmatprep.subr.mxu0 0.0
    %179 = vmatpush1.msra.mxu0 0.0
    %180 = vmatprep.subr.mxu0 0.0
    %181 = vmatpush1.msra.mxu0 0.0
    %182 = vmatprep.subr.mxu0 0.0
    %183 = vmatpush1.msra.mxu0 0.0
    %184 = vmatprep.subr.mxu0 0.0
    %185 = vmatpush1.msra.mxu0 0.0
    %186 = vmatprep.subr.mxu0 0.0
    %187 = vmatpush1.msra.mxu0 0.0
    %188 = vmatprep.subr.mxu0 0.0
    %189 = vmatpush1.msra.mxu0 0.0
    %190 = vmatprep.subr.mxu0 0.0
    %191 = vmatpush1.msra.mxu0 0.0
    %192 = vmatprep.subr.mxu0 0.0
    %193 = vmatpush1.msra.mxu0 0.0
    %194 = vmatprep.subr.mxu0 0.0
    %195 = vmatpush1.msra.mxu0 0.0
    %196 = vmatprep.mubr.f32.mxu0 0.0
    %197 = vmatmul.mubr.f32.gmra.mrb[0].mxu0 %v59
    %v198 = vpop.f32.mrb[0].mxu0
    %v199 = vadd.f32 0.0, %v198
    %v200 = vpop.f32.mrb[0].mxu0
    %v201 = vadd.f32 0.0, %v200
    %202 = vdwg.mxu0
    %203 = vmatprep.subr.mxu0 %v30
    %204 = vmatpush1.msra.mxu0 %v29
    %205 = vmatprep.subr.mxu0 %v38
    %206 = vmatpush1.msra.mxu0 %v37
    %207 = vmatprep.subr.mxu0 %v46
    %208 = vmatpush1.msra.mxu0 %v45
    %209 = vmatprep.subr.mxu0 %v54
    %210 = vmatpush1.msra.mxu0 %v53
    %211 = vmatprep.subr.mxu0 0.0
    %212 = vmatpush1.msra.mxu0 0.0
    %213 = vmatprep.subr.mxu0 0.0
    %214 = vmatpush1.msra.mxu0 0.0
    %215 = vmatprep.subr.mxu0 0.0
    %216 = vmatpush1.msra.mxu0 0.0
    %217 = vmatprep.subr.mxu0 0.0
    %218 = vmatpush1.msra.mxu0 0.0
    %219 = vmatprep.subr.mxu0 0.0
    %220 = vmatpush1.msra.mxu0 0.0
    %221 = vmatprep.subr.mxu0 0.0
    %222 = vmatpush1.msra.mxu0 0.0
    %223 = vmatprep.subr.mxu0 0.0
    %224 = vmatpush1.msra.mxu0 0.0
    %225 = vmatprep.subr.mxu0 0.0
    %226 = vmatpush1.msra.mxu0 0.0
    %227 = vmatprep.subr.mxu0 0.0
    %228 = vmatpush1.msra.mxu0 0.0
    %229 = vmatprep.subr.mxu0 0.0
    %230 = vmatpush1.msra.mxu0 0.0
    %231 = vmatprep.subr.mxu0 0.0
    %232 = vmatpush1.msra.mxu0 0.0
    %233 = vmatprep.subr.mxu0 0.0
    %234 = vmatpush1.msra.mxu0 0.0
    %235 = vmatprep.subr.mxu0 0.0
    %236 = vmatpush1.msra.mxu0 0.0
    %237 = vmatprep.subr.mxu0 0.0
    %238 = vmatpush1.msra.mxu0 0.0
    %239 = vmatprep.subr.mxu0 0.0
    %240 = vmatpush1.msra.mxu0 0.0
    %241 = vmatprep.subr.mxu0 0.0
    %242 = vmatpush1.msra.mxu0 0.0
    %243 = vmatprep.subr.mxu0 0.0
    %244 = vmatpush1.msra.mxu0 0.0
    %245 = vmatprep.subr.mxu0 0.0
    %246 = vmatpush1.msra.mxu0 0.0
    %247 = vmatprep.subr.mxu0 0.0
    %248 = vmatpush1.msra.mxu0 0.0
    %249 = vmatprep.subr.mxu0 0.0
    %250 = vmatpush1.msra.mxu0 0.0
    %251 = vmatprep.subr.mxu0 0.0
    %252 = vmatpush1.msra.mxu0 0.0
    %253 = vmatprep.subr.mxu0 0.0
    %254 = vmatpush1.msra.mxu0 0.0
    %255 = vmatprep.subr.mxu0 0.0
    %256 = vmatpush1.msra.mxu0 0.0
    %257 = vmatprep.subr.mxu0 0.0
    %258 = vmatpush1.msra.mxu0 0.0
    %259 = vmatprep.subr.mxu0 0.0
    %260 = vmatpush1.msra.mxu0 0.0
    %261 = vmatprep.subr.mxu0 0.0
    %262 = vmatpush1.msra.mxu0 0.0
    %263 = vmatprep.subr.mxu0 0.0
    %264 = vmatpush1.msra.mxu0 0.0
    %265 = vmatprep.subr.mxu0 0.0
    %266 = vmatpush1.msra.mxu0 0.0
    %267 = vmatprep.mubr.f32.mxu0 0.0
    %268 = vmatmul.mubr.f32.gmra.mrb[0].mxu0 %v59
    %v269 = vpop.f32.mrb[0].mxu0
    %v270 = vadd.f32 0.0, %v269
    %v271 = vpop.f32.mrb[0].mxu0
    %v272 = vadd.f32 0.0, %v271
    %273 = vdwg.mxu0
    %274 = vmatprep.subr.mxu0 %v32
    %275 = vmatpush1.msra.mxu0 %v31
    %276 = vmatprep.subr.mxu0 %v40
    %277 = vmatpush1.msra.mxu0 %v39
    %278 = vmatprep.subr.mxu0 %v48
    %279 = vmatpush1.msra.mxu0 %v47
    %280 = vmatprep.subr.mxu0 %v56
    %281 = vmatpush1.msra.mxu0 %v55
    %282 = vmatprep.subr.mxu0 0.0
    %283 = vmatpush1.msra.mxu0 0.0
    %284 = vmatprep.subr.mxu0 0.0
    %285 = vmatpush1.msra.mxu0 0.0
    %286 = vmatprep.subr.mxu0 0.0
    %287 = vmatpush1.msra.mxu0 0.0
    %288 = vmatprep.subr.mxu0 0.0
    %289 = vmatpush1.msra.mxu0 0.0
    %290 = vmatprep.subr.mxu0 0.0
    %291 = vmatpush1.msra.mxu0 0.0
    %292 = vmatprep.subr.mxu0 0.0
    %293 = vmatpush1.msra.mxu0 0.0
    %294 = vmatprep.subr.mxu0 0.0
    %295 = vmatpush1.msra.mxu0 0.0
    %296 = vmatprep.subr.mxu0 0.0
    %297 = vmatpush1.msra.mxu0 0.0
    %298 = vmatprep.subr.mxu0 0.0
    %299 = vmatpush1.msra.mxu0 0.0
    %300 = vmatprep.subr.mxu0 0.0
    %301 = vmatpush1.msra.mxu0 0.0
    %302 = vmatprep.subr.mxu0 0.0
    %303 = vmatpush1.msra.mxu0 0.0
    %304 = vmatprep.subr.mxu0 0.0
    %305 = vmatpush1.msra.mxu0 0.0
    %306 = vmatprep.subr.mxu0 0.0
    %307 = vmatpush1.msra.mxu0 0.0
    %308 = vmatprep.subr.mxu0 0.0
    %309 = vmatpush1.msra.mxu0 0.0
    %310 = vmatprep.subr.mxu0 0.0
    %311 = vmatpush1.msra.mxu0 0.0
    %312 = vmatprep.subr.mxu0 0.0
    %313 = vmatpush1.msra.mxu0 0.0
    %314 = vmatprep.subr.mxu0 0.0
    %315 = vmatpush1.msra.mxu0 0.0
    %316 = vmatprep.subr.mxu0 0.0
    %317 = vmatpush1.msra.mxu0 0.0
    %318 = vmatprep.subr.mxu0 0.0
    %319 = vmatpush1.msra.mxu0 0.0
    %320 = vmatprep.subr.mxu0 0.0
    %321 = vmatpush1.msra.mxu0 0.0
    %322 = vmatprep.subr.mxu0 0.0
    %323 = vmatpush1.msra.mxu0 0.0
    %324 = vmatprep.subr.mxu0 0.0
    %325 = vmatpush1.msra.mxu0 0.0
    %326 = vmatprep.subr.mxu0 0.0
    %327 = vmatpush1.msra.mxu0 0.0
    %328 = vmatprep.subr.mxu0 0.0
    %329 = vmatpush1.msra.mxu0 0.0
    %330 = vmatprep.subr.mxu0 0.0
    %331 = vmatpush1.msra.mxu0 0.0
    %332 = vmatprep.subr.mxu0 0.0
    %333 = vmatpush1.msra.mxu0 0.0
    %334 = vmatprep.subr.mxu0 0.0
    %335 = vmatpush1.msra.mxu0 0.0
    %336 = vmatprep.subr.mxu0 0.0
    %337 = vmatpush1.msra.mxu0 0.0
    %338 = vmatprep.mubr.f32.mxu0 0.0
    %339 = vmatmul.mubr.f32.gmra.mrb[0].mxu0 %v59
    %v340 = vpop.f32.mrb[0].mxu0
    %v341 = vadd.f32 0.0, %v340
    %v342 = vpop.f32.mrb[0].mxu0
    %v343 = vadd.f32 0.0, %v342
    %344 = vdwg.mxu0
    %v345 = vrot.slane %v128, 4
    %v346 = vadd.f32 %v128, %v345
    %v347 = vrot.slane %v346, 2
    %v348 = vadd.f32 %v346, %v347
    %v349 = vrot.slane %v348, 1
    %v350 = vadd.f32 %v348, %v349
    %v351 = vrot.slane %v130, 4
    %v352 = vadd.f32 %v130, %v351
    %v353 = vrot.slane %v352, 2
    %v354 = vadd.f32 %v352, %v353
    %v355 = vrot.slane %v354, 1
    %v356 = vadd.f32 %v354, %v355
    %v357 = vrot.slane %v199, 4
    %v358 = vadd.f32 %v199, %v357
    %v359 = vrot.slane %v358, 2
    %v360 = vadd.f32 %v358, %v359
    %v361 = vrot.slane %v360, 1
    %v362 = vadd.f32 %v360, %v361
    %v363 = vrot.slane %v201, 4
    %v364 = vadd.f32 %v201, %v363
    %v365 = vrot.slane %v364, 2
    %v366 = vadd.f32 %v364, %v365
    %v367 = vrot.slane %v366, 1
    %v368 = vadd.f32 %v366, %v367
    %v369 = vrot.slane %v270, 4
    %v370 = vadd.f32 %v270, %v369
    %v371 = vrot.slane %v370, 2
    %v372 = vadd.f32 %v370, %v371
    %v373 = vrot.slane %v372, 1
    %v374 = vadd.f32 %v372, %v373
    %v375 = vrot.slane %v272, 4
    %v376 = vadd.f32 %v272, %v375
    %v377 = vrot.slane %v376, 2
    %v378 = vadd.f32 %v376, %v377
    %v379 = vrot.slane %v378, 1
    %v380 = vadd.f32 %v378, %v379
    %v381 = vrot.slane %v341, 4
    %v382 = vadd.f32 %v341, %v381
    %v383 = vrot.slane %v382, 2
    %v384 = vadd.f32 %v382, %v383
    %v385 = vrot.slane %v384, 1
    %v386 = vadd.f32 %v384, %v385
    %v387 = vrot.slane %v343, 4
    %v388 = vadd.f32 %v343, %v387
    %v389 = vrot.slane %v388, 2
    %v390 = vadd.f32 %v388, %v389
    %v391 = vrot.slane %v390, 1
    %v392 = vadd.f32 %v390, %v391
    %v393 = vrcp.pop 8.0
    %v394 = vmul.f32 %v350, %v393
    %v395 = vmul.f32 %v356, %v393
    %v396 = vmul.f32 %v362, %v393
    %v397 = vmul.f32 %v368, %v393
    %v398 = vmul.f32 %v374, %v393
    %v399 = vmul.f32 %v380, %v393
    %v400 = vmul.f32 %v386, %v393
    %v401 = vmul.f32 %v392, %v393
    %v402 = vsub.f32 %v128, %v394
    %v403 = vsub.f32 %v130, %v395
    %v404 = vsub.f32 %v199, %v396
    %v405 = vsub.f32 %v201, %v397
    %v406 = vsub.f32 %v270, %v398
    %v407 = vsub.f32 %v272, %v399
    %v408 = vsub.f32 %v341, %v400
    %v409 = vsub.f32 %v343, %v401
    %v410 = vmul.f32 %v402, %v402
    %v411 = vmul.f32 %v403, %v403
    %v412 = vmul.f32 %v404, %v404
    %v413 = vmul.f32 %v405, %v405
    %v414 = vmul.f32 %v406, %v406
    %v415 = vmul.f32 %v407, %v407
    %v416 = vmul.f32 %v408, %v408
    %v417 = vmul.f32 %v409, %v409
    %v418 = vrot.slane %v410, 4
    %v419 = vadd.f32 %v410, %v418
    %v420 = vrot.slane %v419, 2
    %v421 = vadd.f32 %v419, %v420
    %v422 = vrot.slane %v421, 1
    %v423 = vadd.f32 %v421, %v422
    %v424 = vrot.slane %v411, 4
    %v425 = vadd.f32 %v411, %v424
    %v426 = vrot.slane %v425, 2
    %v427 = vadd.f32 %v425, %v426
    %v428 = vrot.slane %v427, 1
    %v429 = vadd.f32 %v427, %v428
    %v430 = vrot.slane %v412, 4
    %v431 = vadd.f32 %v412, %v430
    %v432 = vrot.slane %v431, 2
    %v433 = vadd.f32 %v431, %v432
    %v434 = vrot.slane %v433, 1
    %v435 = vadd.f32 %v433, %v434
    %v436 = vrot.slane %v413, 4
    %v437 = vadd.f32 %v413, %v436
    %v438 = vrot.slane %v437, 2
    %v439 = vadd.f32 %v437, %v438
    %v440 = vrot.slane %v439, 1
    %v441 = vadd.f32 %v439, %v440
    %v442 = vrot.slane %v414, 4
    %v443 = vadd.f32 %v414, %v442
    %v444 = vrot.slane %v443, 2
    %v445 = vadd.f32 %v443, %v444
    %v446 = vrot.slane %v445, 1
    %v447 = vadd.f32 %v445, %v446
    %v448 = vrot.slane %v415, 4
    %v449 = vadd.f32 %v415, %v448
    %v450 = vrot.slane %v449, 2
    %v451 = vadd.f32 %v449, %v450
    %v452 = vrot.slane %v451, 1
    %v453 = vadd.f32 %v451, %v452
    %v454 = vrot.slane %v416, 4
    %v455 = vadd.f32 %v416, %v454
    %v456 = vrot.slane %v455, 2
    %v457 = vadd.f32 %v455, %v456
    %v458 = vrot.slane %v457, 1
    %v459 = vadd.f32 %v457, %v458
    %v460 = vrot.slane %v417, 4
    %v461 = vadd.f32 %v417, %v460
    %v462 = vrot.slane %v461, 2
    %v463 = vadd.f32 %v461, %v462
    %v464 = vrot.slane %v463, 1
    %v465 = vadd.f32 %v463, %v464
    %v466 = vmul.f32 %v423, %v393
    %v467 = vmul.f32 %v429, %v393
    %v468 = vmul.f32 %v435, %v393
    %v469 = vmul.f32 %v441, %v393
    %v470 = vmul.f32 %v447, %v393
    %v471 = vmul.f32 %v453, %v393
    %v472 = vmul.f32 %v459, %v393
    %v473 = vmul.f32 %v465, %v393
    %v474 = vadd.f32 %v466, 1e-05
    %v475 = vadd.f32 %v467, 1e-05
    %v476 = vadd.f32 %v468, 1e-05
    %v477 = vadd.f32 %v469, 1e-05
    %v478 = vadd.f32 %v470, 1e-05
    %v479 = vadd.f32 %v471, 1e-05
    %v480 = vadd.f32 %v472, 1e-05
    %v481 = vadd.f32 %v473, 1e-05
    %v482 = vrsqrt.pop %v474
    %v483 = vrsqrt.pop %v475
    %v484 = vrsqrt.pop %v476
    %v485 = vrsqrt.pop %v477
    %v486 = vrsqrt.pop %v478
    %v487 = vrsqrt.pop %v479
    %v488 = vrsqrt.pop %v480
    %v489 = vrsqrt.pop %v481
    %v490 = vmul.f32 %v402, %v482
    %v491 = vmul.f32 %v403, %v483
    %v492 = vmul.f32 %v404, %v484
    %v493 = vmul.f32 %v405, %v485
    %v494 = vmul.f32 %v406, %v486
    %v495 = vmul.f32 %v407, %v487
    %v496 = vmul.f32 %v408, %v488
    %v497 = vmul.f32 %v409, %v489
    %v498 = vld [vmem:[%s2] sm:$0xff]
    %v500 = vlaneseq
    %v501 = vshrl.u32 %v500, 7
    %v502 = vsub.s32 0, %v501
    %v503 = vrot.slane %v498, %v502
    %v504 = vlaneseq
    %v505 = vshrl.u32 %v504, 7
    %v506 = vsub.s32 1, %v505
    %v507 = vrot.slane %v498, %v506
    %v508 = vlaneseq
    %v509 = vshrl.u32 %v508, 7
    %v510 = vsub.s32 2, %v509
    %v511 = vrot.slane %v498, %v510
    %v512 = vlaneseq
    %v513 = vshrl.u32 %v512, 7
    %v514 = vsub.s32 3, %v513
    %v515 = vrot.slane %v498, %v514
    %v516 = vlaneseq
    %v517 = vshrl.u32 %v516, 7
    %v518 = vsub.s32 4, %v517
    %v519 = vrot.slane %v498, %v518
    %v520 = vlaneseq
    %v521 = vshrl.u32 %v520, 7
    %v522 = vsub.s32 5, %v521
    %v523 = vrot.slane %v498, %v522
    %v524 = vlaneseq
    %v525 = vshrl.u32 %v524, 7
    %v526 = vsub.s32 6, %v525
    %v527 = vrot.slane %v498, %v526
    %v528 = vlaneseq
    %v529 = vshrl.u32 %v528, 7
    %v530 = vsub.s32 7, %v529
    %v531 = vrot.slane %v498, %v530
    %v540 = vmul.f32 %v490, %v503
    %v541 = vmul.f32 %v491, %v507
    %v542 = vmul.f32 %v492, %v511
    %v543 = vmul.f32 %v493, %v515
    %v544 = vmul.f32 %v494, %v519
    %v545 = vmul.f32 %v495, %v523
    %v546 = vmul.f32 %v496, %v527
    %v547 = vmul.f32 %v497, %v531
    %v548 = vld [vmem:[%s3] sm:$0xff]
    %v550 = vlaneseq
    %v551 = vshrl.u32 %v550, 7
    %v552 = vsub.s32 0, %v551
    %v553 = vrot.slane %v548, %v552
    %v554 = vlaneseq
    %v555 = vshrl.u32 %v554, 7
    %v556 = vsub.s32 1, %v555
    %v557 = vrot.slane %v548, %v556
    %v558 = vlaneseq
    %v559 = vshrl.u32 %v558, 7
    %v560 = vsub.s32 2, %v559
    %v561 = vrot.slane %v548, %v560
    %v562 = vlaneseq
    %v563 = vshrl.u32 %v562, 7
    %v564 = vsub.s32 3, %v563
    %v565 = vrot.slane %v548, %v564
    %v566 = vlaneseq
    %v567 = vshrl.u32 %v566, 7
    %v568 = vsub.s32 4, %v567
    %v569 = vrot.slane %v548, %v568
    %v570 = vlaneseq
    %v571 = vshrl.u32 %v570, 7
    %v572 = vsub.s32 5, %v571
    %v573 = vrot.slane %v548, %v572
    %v574 = vlaneseq
    %v575 = vshrl.u32 %v574, 7
    %v576 = vsub.s32 6, %v575
    %v577 = vrot.slane %v548, %v576
    %v578 = vlaneseq
    %v579 = vshrl.u32 %v578, 7
    %v580 = vsub.s32 7, %v579
    %v581 = vrot.slane %v548, %v580
    %v590 = vadd.f32 %v540, %v553
    %v591 = vadd.f32 %v541, %v557
    %v592 = vadd.f32 %v542, %v561
    %v593 = vadd.f32 %v543, %v565
    %v594 = vadd.f32 %v544, %v569
    %v595 = vadd.f32 %v545, %v573
    %v596 = vadd.f32 %v546, %v577
    %v597 = vadd.f32 %v547, %v581
    %v598 = vmax.f32 %v590, 0.0
    %v599 = vmax.f32 %v591, 0.0
    %v600 = vmax.f32 %v592, 0.0
    %v601 = vmax.f32 %v593, 0.0
    %v602 = vmax.f32 %v594, 0.0
    %v603 = vmax.f32 %v595, 0.0
    %v604 = vmax.f32 %v596, 0.0
    %v605 = vmax.f32 %v597, 0.0
    %v606 = vld [vmem:[%s4] sm:$0xff]
    %v607 = vld [vmem:[%s4 + $0x8] sm:$0xff]
    %v608 = vld [vmem:[%s4 + $0x10] sm:$0xff]
    %v609 = vld [vmem:[%s4 + $0x18] sm:$0xff]
    %v610 = vld [vmem:[%s4 + $0x20] sm:$0xff]
    %v611 = vld [vmem:[%s4 + $0x28] sm:$0xff]
    %v612 = vld [vmem:[%s4 + $0x30] sm:$0xff]
    %v613 = vld [vmem:[%s4 + $0x38] sm:$0xff]
    %v614 = vld [vmem:[%s4 + $0x40] sm:$0xff]
    %v615 = vld [vmem:[%s4 + $0x48] sm:$0xff]
    %v616 = vld [vmem:[%s4 + $0x50] sm:$0xff]
    %v617 = vld [vmem:[%s4 + $0x58] sm:$0xff]
    %v618 = vld [vmem:[%s4 + $0x60] sm:$0xff]
    %v619 = vld [vmem:[%s4 + $0x68] sm:$0xff]
    %v620 = vld [vmem:[%s4 + $0x70] sm:$0xff]
    %v621 = vld [vmem:[%s4 + $0x78] sm:$0xff]
    %v622 = vld [vmem:[%s4 + $0x80] sm:$0xff]
    %v623 = vld [vmem:[%s4 + $0x88] sm:$0xff]
    %v624 = vld [vmem:[%s4 + $0x90] sm:$0xff]
    %v625 = vld [vmem:[%s4 + $0x98] sm:$0xff]
    %v626 = vld [vmem:[%s4 + $0xa0] sm:$0xff]
    %v627 = vld [vmem:[%s4 + $0xa8] sm:$0xff]
    %v628 = vld [vmem:[%s4 + $0xb0] sm:$0xff]
    %v629 = vld [vmem:[%s4 + $0xb8] sm:$0xff]
    %v630 = vld [vmem:[%s4 + $0xc0] sm:$0xff]
    %v631 = vld [vmem:[%s4 + $0xc8] sm:$0xff]
    %v632 = vld [vmem:[%s4 + $0xd0] sm:$0xff]
    %v633 = vld [vmem:[%s4 + $0xd8] sm:$0xff]
    %v634 = vld [vmem:[%s4 + $0xe0] sm:$0xff]
    %v635 = vld [vmem:[%s4 + $0xe8] sm:$0xff]
    %v636 = vld [vmem:[%s4 + $0xf0] sm:$0xff]
    %v637 = vld [vmem:[%s4 + $0xf8] sm:$0xff]
    %v638 = vld [vmem:[%s4 + $0x100] sm:$0xff]
    %v639 = vld [vmem:[%s4 + $0x108] sm:$0xff]
    %v640 = vld [vmem:[%s4 + $0x110] sm:$0xff]
    %v641 = vld [vmem:[%s4 + $0x118] sm:$0xff]
    %v642 = vld [vmem:[%s4 + $0x120] sm:$0xff]
    %v643 = vld [vmem:[%s4 + $0x128] sm:$0xff]
    %v644 = vld [vmem:[%s4 + $0x130] sm:$0xff]
    %v645 = vld [vmem:[%s4 + $0x138] sm:$0xff]
    %v646 = vld [vmem:[%s4 + $0x140] sm:$0xff]
    %v647 = vld [vmem:[%s4 + $0x148] sm:$0xff]
    %v648 = vld [vmem:[%s4 + $0x150] sm:$0xff]
    %v649 = vld [vmem:[%s4 + $0x158] sm:$0xff]
    %v650 = vld [vmem:[%s4 + $0x160] sm:$0xff]
    %v651 = vld [vmem:[%s4 + $0x168] sm:$0xff]
    %v652 = vld [vmem:[%s4 + $0x170] sm:$0xff]
    %v653 = vld [vmem:[%s4 + $0x178] sm:$0xff]
    %v654 = vld [vmem:[%s4 + $0x180] sm:$0xff]
    %v655 = vld [vmem:[%s4 + $0x188] sm:$0xff]
    %v656 = vld [vmem:[%s4 + $0x190] sm:$0xff]
    %v657 = vld [vmem:[%s4 + $0x198] sm:$0xff]
    %v658 = vld [vmem:[%s4 + $0x1a0] sm:$0xff]
    %v659 = vld [vmem:[%s4 + $0x1a8] sm:$0xff]
    %v660 = vld [vmem:[%s4 + $0x1b0] sm:$0xff]
    %v661 = vld [vmem:[%s4 + $0x1b8] sm:$0xff]
    %v662 = vld [vmem:[%s4 + $0x1c0] sm:$0xff]
    %v663 = vld [vmem:[%s4 + $0x1c8] sm:$0xff]
    %v664 = vld [vmem:[%s4 + $0x1d0] sm:$0xff]
    %v665 = vld [vmem:[%s4 + $0x1d8] sm:$0xff]
    %v666 = vld [vmem:[%s4 + $0x1e0] sm:$0xff]
    %v667 = vld [vmem:[%s4 + $0x1e8] sm:$0xff]
    %v668 = vld [vmem:[%s4 + $0x1f0] sm:$0xff]
    %v669 = vld [vmem:[%s4 + $0x1f8] sm:$0xff]
    %v670 = vld [vmem:[%s4 + $0x200] sm:$0xff]
    %v671 = vld [vmem:[%s4 + $0x208] sm:$0xff]
    %v672 = vld [vmem:[%s4 + $0x210] sm:$0xff]
    %v673 = vld [vmem:[%s4 + $0x218] sm:$0xff]
    %v674 = vld [vmem:[%s4 + $0x220] sm:$0xff]
    %v675 = vld [vmem:[%s4 + $0x228] sm:$0xff]
    %v676 = vld [vmem:[%s4 + $0x230] sm:$0xff]
    %v677 = vld [vmem:[%s4 + $0x238] sm:$0xff]
    %v678 = vld [vmem:[%s4 + $0x240] sm:$0xff]
    %v679 = vld [vmem:[%s4 + $0x248] sm:$0xff]
    %v680 = vld [vmem:[%s4 + $0x250] sm:$0xff]
    %v681 = vld [vmem:[%s4 + $0x258] sm:$0xff]
    %v682 = vld [vmem:[%s4 + $0x260] sm:$0xff]
    %v683 = vld [vmem:[%s4 + $0x268] sm:$0xff]
    %v684 = vld [vmem:[%s4 + $0x270] sm:$0xff]
    %v685 = vld [vmem:[%s4 + $0x278] sm:$0xff]
    %v686 = vld [vmem:[%s4 + $0x280] sm:$0xff]
    %v687 = vld [vmem:[%s4 + $0x288] sm:$0xff]
    %v688 = vld [vmem:[%s4 + $0x290] sm:$0xff]
    %v689 = vld [vmem:[%s4 + $0x298] sm:$0xff]
    %v690 = vld [vmem:[%s4 + $0x2a0] sm:$0xff]
    %v691 = vld [vmem:[%s4 + $0x2a8] sm:$0xff]
    %v692 = vld [vmem:[%s4 + $0x2b0] sm:$0xff]
    %v693 = vld [vmem:[%s4 + $0x2b8] sm:$0xff]
    %v694 = vld [vmem:[%s4 + $0x2c0] sm:$0xff]
    %v695 = vld [vmem:[%s4 + $0x2c8] sm:$0xff]
    %v696 = vld [vmem:[%s4 + $0x2d0] sm:$0xff]
    %v697 = vld [vmem:[%s4 + $0x2d8] sm:$0xff]
    %v698 = vld [vmem:[%s4 + $0x2e0] sm:$0xff]
    %v699 = vld [vmem:[%s4 + $0x2e8] sm:$0xff]
    %v700 = vld [vmem:[%s4 + $0x2f0] sm:$0xff]
    %v701 = vld [vmem:[%s4 + $0x2f8] sm:$0xff]
    %v702 = vld [vmem:[%s4 + $0x300] sm:$0xff]
    %v703 = vld [vmem:[%s4 + $0x308] sm:$0xff]
    %v704 = vld [vmem:[%s4 + $0x310] sm:$0xff]
    %v705 = vld [vmem:[%s4 + $0x318] sm:$0xff]
    %v706 = vld [vmem:[%s4 + $0x320] sm:$0xff]
    %v707 = vld [vmem:[%s4 + $0x328] sm:$0xff]
    %v708 = vld [vmem:[%s4 + $0x330] sm:$0xff]
    %v709 = vld [vmem:[%s4 + $0x338] sm:$0xff]
    %v710 = vld [vmem:[%s4 + $0x340] sm:$0xff]
    %v711 = vld [vmem:[%s4 + $0x348] sm:$0xff]
    %v712 = vld [vmem:[%s4 + $0x350] sm:$0xff]
    %v713 = vld [vmem:[%s4 + $0x358] sm:$0xff]
    %v714 = vld [vmem:[%s4 + $0x360] sm:$0xff]
    %v715 = vld [vmem:[%s4 + $0x368] sm:$0xff]
    %v716 = vld [vmem:[%s4 + $0x370] sm:$0xff]
    %v717 = vld [vmem:[%s4 + $0x378] sm:$0xff]
    %v718 = vld [vmem:[%s4 + $0x380] sm:$0xff]
    %v719 = vld [vmem:[%s4 + $0x388] sm:$0xff]
    %v720 = vld [vmem:[%s4 + $0x390] sm:$0xff]
    %v721 = vld [vmem:[%s4 + $0x398] sm:$0xff]
    %v722 = vld [vmem:[%s4 + $0x3a0] sm:$0xff]
    %v723 = vld [vmem:[%s4 + $0x3a8] sm:$0xff]
    %v724 = vld [vmem:[%s4 + $0x3b0] sm:$0xff]
    %v725 = vld [vmem:[%s4 + $0x3b8] sm:$0xff]
    %v726 = vld [vmem:[%s4 + $0x3c0] sm:$0xff]
    %v727 = vld [vmem:[%s4 + $0x3c8] sm:$0xff]
    %v728 = vld [vmem:[%s4 + $0x3d0] sm:$0xff]
    %v729 = vld [vmem:[%s4 + $0x3d8] sm:$0xff]
    %v730 = vld [vmem:[%s4 + $0x3e0] sm:$0xff]
    %v731 = vld [vmem:[%s4 + $0x3e8] sm:$0xff]
    %v732 = vld [vmem:[%s4 + $0x3f0] sm:$0xff]
    %v733 = vld [vmem:[%s4 + $0x3f8] sm:$0xff]
    %v734 = vld [vmem:[%s4 + $0x400] sm:$0xff]
    %v735 = vld [vmem:[%s4 + $0x408] sm:$0xff]
    %v736 = vld [vmem:[%s4 + $0x410] sm:$0xff]
    %v737 = vld [vmem:[%s4 + $0x418] sm:$0xff]
    %v738 = vld [vmem:[%s4 + $0x420] sm:$0xff]
    %v739 = vld [vmem:[%s4 + $0x428] sm:$0xff]
    %v740 = vld [vmem:[%s4 + $0x430] sm:$0xff]
    %v741 = vld [vmem:[%s4 + $0x438] sm:$0xff]
    %v742 = vld [vmem:[%s4 + $0x440] sm:$0xff]
    %v743 = vld [vmem:[%s4 + $0x448] sm:$0xff]
    %v744 = vld [vmem:[%s4 + $0x450] sm:$0xff]
    %v745 = vld [vmem:[%s4 + $0x458] sm:$0xff]
    %v746 = vld [vmem:[%s4 + $0x460] sm:$0xff]
    %v747 = vld [vmem:[%s4 + $0x468] sm:$0xff]
    %v748 = vld [vmem:[%s4 + $0x470] sm:$0xff]
    %v749 = vld [vmem:[%s4 + $0x478] sm:$0xff]
    %v750 = vld [vmem:[%s4 + $0x480] sm:$0xff]
    %v751 = vld [vmem:[%s4 + $0x488] sm:$0xff]
    %v752 = vld [vmem:[%s4 + $0x490] sm:$0xff]
    %v753 = vld [vmem:[%s4 + $0x498] sm:$0xff]
    %v754 = vld [vmem:[%s4 + $0x4a0] sm:$0xff]
    %v755 = vld [vmem:[%s4 + $0x4a8] sm:$0xff]
    %v756 = vld [vmem:[%s4 + $0x4b0] sm:$0xff]
    %v757 = vld [vmem:[%s4 + $0x4b8] sm:$0xff]
    %v758 = vld [vmem:[%s4 + $0x4c0] sm:$0xff]
    %v759 = vld [vmem:[%s4 + $0x4c8] sm:$0xff]
    %v760 = vld [vmem:[%s4 + $0x4d0] sm:$0xff]
    %v761 = vld [vmem:[%s4 + $0x4d8] sm:$0xff]
    %v762 = vld [vmem:[%s4 + $0x4e0] sm:$0xff]
    %v763 = vld [vmem:[%s4 + $0x4e8] sm:$0xff]
    %v764 = vld [vmem:[%s4 + $0x4f0] sm:$0xff]
    %v765 = vld [vmem:[%s4 + $0x4f8] sm:$0xff]
    %v766 = vld [vmem:[%s4 + $0x500] sm:$0xff]
    %v767 = vld [vmem:[%s4 + $0x508] sm:$0xff]
    %v768 = vld [vmem:[%s4 + $0x510] sm:$0xff]
    %v769 = vld [vmem:[%s4 + $0x518] sm:$0xff]
    %v770 = vld [vmem:[%s4 + $0x520] sm:$0xff]
    %v771 = vld [vmem:[%s4 + $0x528] sm:$0xff]
    %v772 = vld [vmem:[%s4 + $0x530] sm:$0xff]
    %v773 = vld [vmem:[%s4 + $0x538] sm:$0xff]
    %v774 = vld [vmem:[%s4 + $0x540] sm:$0xff]
    %v775 = vld [vmem:[%s4 + $0x548] sm:$0xff]
    %v776 = vld [vmem:[%s4 + $0x550] sm:$0xff]
    %v777 = vld [vmem:[%s4 + $0x558] sm:$0xff]
    %v778 = vld [vmem:[%s4 + $0x560] sm:$0xff]
    %v779 = vld [vmem:[%s4 + $0x568] sm:$0xff]
    %v780 = vld [vmem:[%s4 + $0x570] sm:$0xff]
    %v781 = vld [vmem:[%s4 + $0x578] sm:$0xff]
    %v782 = vld [vmem:[%s4 + $0x580] sm:$0xff]
    %v783 = vld [vmem:[%s4 + $0x588] sm:$0xff]
    %v784 = vld [vmem:[%s4 + $0x590] sm:$0xff]
    %v785 = vld [vmem:[%s4 + $0x598] sm:$0xff]
    %v786 = vld [vmem:[%s4 + $0x5a0] sm:$0xff]
    %v787 = vld [vmem:[%s4 + $0x5a8] sm:$0xff]
    %v788 = vld [vmem:[%s4 + $0x5b0] sm:$0xff]
    %v789 = vld [vmem:[%s4 + $0x5b8] sm:$0xff]
    %v790 = vld [vmem:[%s4 + $0x5c0] sm:$0xff]
    %v791 = vld [vmem:[%s4 + $0x5c8] sm:$0xff]
    %v792 = vld [vmem:[%s4 + $0x5d0] sm:$0xff]
    %v793 = vld [vmem:[%s4 + $0x5d8] sm:$0xff]
    %v794 = vld [vmem:[%s4 + $0x5e0] sm:$0xff]
    %v795 = vld [vmem:[%s4 + $0x5e8] sm:$0xff]
    %v796 = vld [vmem:[%s4 + $0x5f0] sm:$0xff]
    %v797 = vld [vmem:[%s4 + $0x5f8] sm:$0xff]
    %v798 = vld [vmem:[%s4 + $0x600] sm:$0xff]
    %v799 = vld [vmem:[%s4 + $0x608] sm:$0xff]
    %v800 = vld [vmem:[%s4 + $0x610] sm:$0xff]
    %v801 = vld [vmem:[%s4 + $0x618] sm:$0xff]
    %v802 = vld [vmem:[%s4 + $0x620] sm:$0xff]
    %v803 = vld [vmem:[%s4 + $0x628] sm:$0xff]
    %v804 = vld [vmem:[%s4 + $0x630] sm:$0xff]
    %v805 = vld [vmem:[%s4 + $0x638] sm:$0xff]
    %v806 = vld [vmem:[%s4 + $0x640] sm:$0xff]
    %v807 = vld [vmem:[%s4 + $0x648] sm:$0xff]
    %v808 = vld [vmem:[%s4 + $0x650] sm:$0xff]
    %v809 = vld [vmem:[%s4 + $0x658] sm:$0xff]
    %v810 = vld [vmem:[%s4 + $0x660] sm:$0xff]
    %v811 = vld [vmem:[%s4 + $0x668] sm:$0xff]
    %v812 = vld [vmem:[%s4 + $0x670] sm:$0xff]
    %v813 = vld [vmem:[%s4 + $0x678] sm:$0xff]
    %v814 = vld [vmem:[%s4 + $0x680] sm:$0xff]
    %v815 = vld [vmem:[%s4 + $0x688] sm:$0xff]
    %v816 = vld [vmem:[%s4 + $0x690] sm:$0xff]
    %v817 = vld [vmem:[%s4 + $0x698] sm:$0xff]
    %v818 = vld [vmem:[%s4 + $0x6a0] sm:$0xff]
    %v819 = vld [vmem:[%s4 + $0x6a8] sm:$0xff]
    %v820 = vld [vmem:[%s4 + $0x6b0] sm:$0xff]
    %v821 = vld [vmem:[%s4 + $0x6b8] sm:$0xff]
    %v822 = vld [vmem:[%s4 + $0x6c0] sm:$0xff]
    %v823 = vld [vmem:[%s4 + $0x6c8] sm:$0xff]
    %v824 = vld [vmem:[%s4 + $0x6d0] sm:$0xff]
    %v825 = vld [vmem:[%s4 + $0x6d8] sm:$0xff]
    %v826 = vld [vmem:[%s4 + $0x6e0] sm:$0xff]
    %v827 = vld [vmem:[%s4 + $0x6e8] sm:$0xff]
    %v828 = vld [vmem:[%s4 + $0x6f0] sm:$0xff]
    %v829 = vld [vmem:[%s4 + $0x6f8] sm:$0xff]
    %v830 = vld [vmem:[%s4 + $0x700] sm:$0xff]
    %v831 = vld [vmem:[%s4 + $0x708] sm:$0xff]
    %v832 = vld [vmem:[%s4 + $0x710] sm:$0xff]
    %v833 = vld [vmem:[%s4 + $0x718] sm:$0xff]
    %v834 = vld [vmem:[%s4 + $0x720] sm:$0xff]
    %v835 = vld [vmem:[%s4 + $0x728] sm:$0xff]
    %v836 = vld [vmem:[%s4 + $0x730] sm:$0xff]
    %v837 = vld [vmem:[%s4 + $0x738] sm:$0xff]
    %v838 = vld [vmem:[%s4 + $0x740] sm:$0xff]
    %v839 = vld [vmem:[%s4 + $0x748] sm:$0xff]
    %v840 = vld [vmem:[%s4 + $0x750] sm:$0xff]
    %v841 = vld [vmem:[%s4 + $0x758] sm:$0xff]
    %v842 = vld [vmem:[%s4 + $0x760] sm:$0xff]
    %v843 = vld [vmem:[%s4 + $0x768] sm:$0xff]
    %v844 = vld [vmem:[%s4 + $0x770] sm:$0xff]
    %v845 = vld [vmem:[%s4 + $0x778] sm:$0xff]
    %v846 = vld [vmem:[%s4 + $0x780] sm:$0xff]
    %v847 = vld [vmem:[%s4 + $0x788] sm:$0xff]
    %v848 = vld [vmem:[%s4 + $0x790] sm:$0xff]
    %v849 = vld [vmem:[%s4 + $0x798] sm:$0xff]
    %v850 = vld [vmem:[%s4 + $0x7a0] sm:$0xff]
    %v851 = vld [vmem:[%s4 + $0x7a8] sm:$0xff]
    %v852 = vld [vmem:[%s4 + $0x7b0] sm:$0xff]
    %v853 = vld [vmem:[%s4 + $0x7b8] sm:$0xff]
    %v854 = vld [vmem:[%s4 + $0x7c0] sm:$0xff]
    %v855 = vld [vmem:[%s4 + $0x7c8] sm:$0xff]
    %v856 = vld [vmem:[%s4 + $0x7d0] sm:$0xff]
    %v857 = vld [vmem:[%s4 + $0x7d8] sm:$0xff]
    %v858 = vld [vmem:[%s4 + $0x7e0] sm:$0xff]
    %v859 = vld [vmem:[%s4 + $0x7e8] sm:$0xff]
    %v860 = vld [vmem:[%s4 + $0x7f0] sm:$0xff]
    %v861 = vld [vmem:[%s4 + $0x7f8] sm:$0xff]
    %v862 = vld [vmem:[%s5] sm:$0x3]
    %v864 = vlaneseq
    %v865 = vshrl.u32 %v864, 7
    %v866 = vsub.s32 0, %v865
    %v867 = vrot.slane %v862, %v866
    %v868 = vlaneseq
    %v869 = vshrl.u32 %v868, 7
    %v870 = vsub.s32 1, %v869
    %v871 = vrot.slane %v862, %v870
    %874 = vmatprep.subr.mxu0 %v607
    %875 = vmatpush1.msra.mxu0 %v606
    %876 = vmatprep.subr.mxu0 %v609
    %877 = vmatpush1.msra.mxu0 %v608
    %878 = vmatprep.subr.mxu0 %v611
    %879 = vmatpush1.msra.mxu0 %v610
    %880 = vmatprep.subr.mxu0 %v613
    %881 = vmatpush1.msra.mxu0 %v612
    %882 = vmatprep.subr.mxu0 %v615
    %883 = vmatpush1.msra.mxu0 %v614
    %884 = vmatprep.subr.mxu0 %v617
    %885 = vmatpush1.msra.mxu0 %v616
    %886 = vmatprep.subr.mxu0 %v619
    %887 = vmatpush1.msra.mxu0 %v618
    %888 = vmatprep.subr.mxu0 %v621
    %889 = vmatpush1.msra.mxu0 %v620
    %890 = vmatprep.subr.mxu0 %v623
    %891 = vmatpush1.msra.mxu0 %v622
    %892 = vmatprep.subr.mxu0 %v625
    %893 = vmatpush1.msra.mxu0 %v624
    %894 = vmatprep.subr.mxu0 %v627
    %895 = vmatpush1.msra.mxu0 %v626
    %896 = vmatprep.subr.mxu0 %v629
    %897 = vmatpush1.msra.mxu0 %v628
    %898 = vmatprep.subr.mxu0 %v631
    %899 = vmatpush1.msra.mxu0 %v630
    %900 = vmatprep.subr.mxu0 %v633
    %901 = vmatpush1.msra.mxu0 %v632
    %902 = vmatprep.subr.mxu0 %v635
    %903 = vmatpush1.msra.mxu0 %v634
    %904 = vmatprep.subr.mxu0 %v637
    %905 = vmatpush1.msra.mxu0 %v636
    %906 = vmatprep.subr.mxu0 %v639
    %907 = vmatpush1.msra.mxu0 %v638
    %908 = vmatprep.subr.mxu0 %v641
    %909 = vmatpush1.msra.mxu0 %v640
    %910 = vmatprep.subr.mxu0 %v643
    %911 = vmatpush1.msra.mxu0 %v642
    %912 = vmatprep.subr.mxu0 %v645
    %913 = vmatpush1.msra.mxu0 %v644
    %914 = vmatprep.subr.mxu0 %v647
    %915 = vmatpush1.msra.mxu0 %v646
    %916 = vmatprep.subr.mxu0 %v649
    %917 = vmatpush1.msra.mxu0 %v648
    %918 = vmatprep.subr.mxu0 %v651
    %919 = vmatpush1.msra.mxu0 %v650
    %920 = vmatprep.subr.mxu0 %v653
    %921 = vmatpush1.msra.mxu0 %v652
    %922 = vmatprep.subr.mxu0 %v655
    %923 = vmatpush1.msra.mxu0 %v654
    %924 = vmatprep.subr.mxu0 %v657
    %925 = vmatpush1.msra.mxu0 %v656
    %926 = vmatprep.subr.mxu0 %v659
    %927 = vmatpush1.msra.mxu0 %v658
    %928 = vmatprep.subr.mxu0 %v661
    %929 = vmatpush1.msra.mxu0 %v660
    %930 = vmatprep.subr.mxu0 %v663
    %931 = vmatpush1.msra.mxu0 %v662
    %932 = vmatprep.subr.mxu0 %v665
    %933 = vmatpush1.msra.mxu0 %v664
    %934 = vmatprep.subr.mxu0 %v667
    %935 = vmatpush1.msra.mxu0 %v666
    %936 = vmatprep.subr.mxu0 %v669
    %937 = vmatpush1.msra.mxu0 %v668
    %938 = vmatprep.mubr.f32.mxu0 %v599
    %939 = vmatmul.mubr.f32.gmra.mrb[0].mxu0 %v598
    %v940 = vpop.f32.mrb[0].mxu0
    %v941 = vadd.f32 %v867, %v940
    %v942 = vpop.f32.mrb[0].mxu0
    %v943 = vadd.f32 %v871, %v942
    %944 = vdwg.mxu0
    %945 = vmatprep.subr.mxu0 %v671
    %946 = vmatpush1.msra.mxu0 %v670
    %947 = vmatprep.subr.mxu0 %v673
    %948 = vmatpush1.msra.mxu0 %v672
    %949 = vmatprep.subr.mxu0 %v675
    %950 = vmatpush1.msra.mxu0 %v674
    %951 = vmatprep.subr.mxu0 %v677
    %952 = vmatpush1.msra.mxu0 %v676
    %953 = vmatprep.subr.mxu0 %v679
    %954 = vmatpush1.msra.mxu0 %v678
    %955 = vmatprep.subr.mxu0 %v681
    %956 = vmatpush1.msra.mxu0 %v680
    %957 = vmatprep.subr.mxu0 %v683
    %958 = vmatpush1.msra.mxu0 %v682
    %959 = vmatprep.subr.mxu0 %v685
    %960 = vmatpush1.msra.mxu0 %v684
    %961 = vmatprep.subr.mxu0 %v687
    %962 = vmatpush1.msra.mxu0 %v686
    %963 = vmatprep.subr.mxu0 %v689
    %964 = vmatpush1.msra.mxu0 %v688
    %965 = vmatprep.subr.mxu0 %v691
    %966 = vmatpush1.msra.mxu0 %v690
    %967 = vmatprep.subr.mxu0 %v693
    %968 = vmatpush1.msra.mxu0 %v692
    %969 = vmatprep.subr.mxu0 %v695
    %970 = vmatpush1.msra.mxu0 %v694
    %971 = vmatprep.subr.mxu0 %v697
    %972 = vmatpush1.msra.mxu0 %v696
    %973 = vmatprep.subr.mxu0 %v699
    %974 = vmatpush1.msra.mxu0 %v698
    %975 = vmatprep.subr.mxu0 %v701
    %976 = vmatpush1.msra.mxu0 %v700
    %977 = vmatprep.subr.mxu0 %v703
    %978 = vmatpush1.msra.mxu0 %v702
    %979 = vmatprep.subr.mxu0 %v705
    %980 = vmatpush1.msra.mxu0 %v704
    %981 = vmatprep.subr.mxu0 %v707
    %982 = vmatpush1.msra.mxu0 %v706
    %983 = vmatprep.subr.mxu0 %v709
    %984 = vmatpush1.msra.mxu0 %v708
    %985 = vmatprep.subr.mxu0 %v711
    %986 = vmatpush1.msra.mxu0 %v710
    %987 = vmatprep.subr.mxu0 %v713
    %988 = vmatpush1.msra.mxu0 %v712
    %989 = vmatprep.subr.mxu0 %v715
    %990 = vmatpush1.msra.mxu0 %v714
    %991 = vmatprep.subr.mxu0 %v717
    %992 = vmatpush1.msra.mxu0 %v716
    %993 = vmatprep.subr.mxu0 %v719
    %994 = vmatpush1.msra.mxu0 %v718
    %995 = vmatprep.subr.mxu0 %v721
    %996 = vmatpush1.msra.mxu0 %v720
    %997 = vmatprep.subr.mxu0 %v723
    %998 = vmatpush1.msra.mxu0 %v722
    %999 = vmatprep.subr.mxu0 %v725
    %1000 = vmatpush1.msra.mxu0 %v724
    %1001 = vmatprep.subr.mxu0 %v727
    %1002 = vmatpush1.msra.mxu0 %v726
    %1003 = vmatprep.subr.mxu0 %v729
    %1004 = vmatpush1.msra.mxu0 %v728
    %1005 = vmatprep.subr.mxu0 %v731
    %1006 = vmatpush1.msra.mxu0 %v730
    %1007 = vmatprep.subr.mxu0 %v733
    %1008 = vmatpush1.msra.mxu0 %v732
    %1009 = vmatprep.mubr.f32.mxu0 %v601
    %1010 = vmatmul.mubr.f32.gmra.mrb[0].mxu0 %v600
    %v1011 = vpop.f32.mrb[0].mxu0
    %v1012 = vadd.f32 %v941, %v1011
    %v1013 = vpop.f32.mrb[0].mxu0
    %v1014 = vadd.f32 %v943, %v1013
    %1015 = vdwg.mxu0
    %1016 = vmatprep.subr.mxu0 %v735
    %1017 = vmatpush1.msra.mxu0 %v734
    %1018 = vmatprep.subr.mxu0 %v737
    %1019 = vmatpush1.msra.mxu0 %v736
    %1020 = vmatprep.subr.mxu0 %v739
    %1021 = vmatpush1.msra.mxu0 %v738
    %1022 = vmatprep.subr.mxu0 %v741
    %1023 = vmatpush1.msra.mxu0 %v740
    %1024 = vmatprep.subr.mxu0 %v743
    %1025 = vmatpush1.msra.mxu0 %v742
    %1026 = vmatprep.subr.mxu0 %v745
    %1027 = vmatpush1.msra.mxu0 %v744
    %1028 = vmatprep.subr.mxu0 %v747
    %1029 = vmatpush1.msra.mxu0 %v746
    %1030 = vmatprep.subr.mxu0 %v749
    %1031 = vmatpush1.msra.mxu0 %v748
    %1032 = vmatprep.subr.mxu0 %v751
    %1033 = vmatpush1.msra.mxu0 %v750
    %1034 = vmatprep.subr.mxu0 %v753
    %1035 = vmatpush1.msra.mxu0 %v752
    %1036 = vmatprep.subr.mxu0 %v755
    %1037 = vmatpush1.msra.mxu0 %v754
    %1038 = vmatprep.subr.mxu0 %v757
    %1039 = vmatpush1.msra.mxu0 %v756
    %1040 = vmatprep.subr.mxu0 %v759
    %1041 = vmatpush1.msra.mxu0 %v758
    %1042 = vmatprep.subr.mxu0 %v761
    %1043 = vmatpush1.msra.mxu0 %v760
    %1044 = vmatprep.subr.mxu0 %v763
    %1045 = vmatpush1.msra.mxu0 %v762
    %1046 = vmatprep.subr.mxu0 %v765
    %1047 = vmatpush1.msra.mxu0 %v764
    %1048 = vmatprep.subr.mxu0 %v767
    %1049 = vmatpush1.msra.mxu0 %v766
    %1050 = vmatprep.subr.mxu0 %v769
    %1051 = vmatpush1.msra.mxu0 %v768
    %1052 = vmatprep.subr.mxu0 %v771
    %1053 = vmatpush1.msra.mxu0 %v770
    %1054 = vmatprep.subr.mxu0 %v773
    %1055 = vmatpush1.msra.mxu0 %v772
    %1056 = vmatprep.subr.mxu0 %v775
    %1057 = vmatpush1.msra.mxu0 %v774
    %1058 = vmatprep.subr.mxu0 %v777
    %1059 = vmatpush1.msra.mxu0 %v776
    %1060 = vmatprep.subr.mxu0 %v779
    %1061 = vmatpush1.msra.mxu0 %v778
    %1062 = vmatprep.subr.mxu0 %v781
    %1063 = vmatpush1.msra.mxu0 %v780
    %1064 = vmatprep.subr.mxu0 %v783
    %1065 = vmatpush1.msra.mxu0 %v782
    %1066 = vmatprep.subr.mxu0 %v785
    %1067 = vmatpush1.msra.mxu0 %v784
    %1068 = vmatprep.subr.mxu0 %v787
    %1069 = vmatpush1.msra.mxu0 %v786
    %1070 = vmatprep.subr.mxu0 %v789
    %1071 = vmatpush1.msra.mxu0 %v788
    %1072 = vmatprep.subr.mxu0 %v791
    %1073 = vmatpush1.msra.mxu0 %v790
    %1074 = vmatprep.subr.mxu0 %v793
    %1075 = vmatpush1.msra.mxu0 %v792
    %1076 = vmatprep.subr.mxu0 %v795
    %1077 = vmatpush1.msra.mxu0 %v794
    %1078 = vmatprep.subr.mxu0 %v797
    %1079 = vmatpush1.msra.mxu0 %v796
    %1080 = vmatprep.mubr.f32.mxu0 %v603
    %1081 = vmatmul.mubr.f32.gmra.mrb[0].mxu0 %v602
    %v1082 = vpop.f32.mrb[0].mxu0
    %v1083 = vadd.f32 %v1012, %v1082
    %v1084 = vpop.f32.mrb[0].mxu0
    %v1085 = vadd.f32 %v1014, %v1084
    %1086 = vdwg.mxu0
    %1087 = vmatprep.subr.mxu0 %v799
    %1088 = vmatpush1.msra.mxu0 %v798
    %1089 = vmatprep.subr.mxu0 %v801
    %1090 = vmatpush1.msra.mxu0 %v800
    %1091 = vmatprep.subr.mxu0 %v803
    %1092 = vmatpush1.msra.mxu0 %v802
    %1093 = vmatprep.subr.mxu0 %v805
    %1094 = vmatpush1.msra.mxu0 %v804
    %1095 = vmatprep.subr.mxu0 %v807
    %1096 = vmatpush1.msra.mxu0 %v806
    %1097 = vmatprep.subr.mxu0 %v809
    %1098 = vmatpush1.msra.mxu0 %v808
    %1099 = vmatprep.subr.mxu0 %v811
    %1100 = vmatpush1.msra.mxu0 %v810
    %1101 = vmatprep.subr.mxu0 %v813
    %1102 = vmatpush1.msra.mxu0 %v812
    %1103 = vmatprep.subr.mxu0 %v815
    %1104 = vmatpush1.msra.mxu0 %v814
    %1105 = vmatprep.subr.mxu0 %v817
    %1106 = vmatpush1.msra.mxu0 %v816
    %1107 = vmatprep.subr.mxu0 %v819
    %1108 = vmatpush1.msra.mxu0 %v818
    %1109 = vmatprep.subr.mxu0 %v821
    %1110 = vmatpush1.msra.mxu0 %v820
    %1111 = vmatprep.subr.mxu0 %v823
    %1112 = vmatpush1.msra.mxu0 %v822
    %1113 = vmatprep.subr.mxu0 %v825
    %1114 = vmatpush1.msra.mxu0 %v824
    %1115 = vmatprep.subr.mxu0 %v827
    %1116 = vmatpush1.msra.mxu0 %v826
    %1117 = vmatprep.subr.mxu0 %v829
    %1118 = vmatpush1.msra.mxu0 %v828
    %1119 = vmatprep.subr.mxu0 %v831
    %1120 = vmatpush1.msra.mxu0 %v830
    %1121 = vmatprep.subr.mxu0 %v833
    %1122 = vmatpush1.msra.mxu0 %v832
    %1123 = vmatprep.subr.mxu0 %v835
    %1124 = vmatpush1.msra.mxu0 %v834
    %1125 = vmatprep.subr.mxu0 %v837
    %1126 = vmatpush1.msra.mxu0 %v836
    %1127 = vmatprep.subr.mxu0 %v839
    %1128 = vmatpush1.msra.mxu0 %v838
    %1129 = vmatprep.subr.mxu0 %v841
    %1130 = vmatpush1.msra.mxu0 %v840
    %1131 = vmatprep.subr.mxu0 %v843
    %1132 = vmatpush1.msra.mxu0 %v842
    %1133 = vmatprep.subr.mxu0 %v845
    %1134 = vmatpush1.msra.mxu0 %v844
    %1135 = vmatprep.subr.mxu0 %v847
    %1136 = vmatpush1.msra.mxu0 %v846
    %1137 = vmatprep.subr.mxu0 %v849
    %1138 = vmatpush1.msra.mxu0 %v848
    %1139 = vmatprep.subr.mxu0 %v851
    %1140 = vmatpush1.msra.mxu0 %v850
    %1141 = vmatprep.subr.mxu0 %v853
    %1142 = vmatpush1.msra.mxu0 %v852
    %1143 = vmatprep.subr.mxu0 %v855
    %1144 = vmatpush1.msra.mxu0 %v854
    %1145 = vmatprep.subr.mxu0 %v857
    %1146 = vmatpush1.msra.mxu0 %v856
    %1147 = vmatprep.subr.mxu0 %v859
    %1148 = vmatpush1.msra.mxu0 %v858
    %1149 = vmatprep.subr.mxu0 %v861
    %1150 = vmatpush1.msra.mxu0 %v860
    %1151 = vmatprep.mubr.f32.mxu0 %v605
    %1152 = vmatmul.mubr.f32.gmra.mrb[0].mxu0 %v604
    %v1153 = vpop.f32.mrb[0].mxu0
    %v1154 = vadd.f32 %v1083, %v1153
    %v1155 = vpop.f32.mrb[0].mxu0
    %v1156 = vadd.f32 %v1085, %v1155
    %1157 = vdwg.mxu0
    %1158 = vst [vmem:[#allocation2] sm:$0xff] %v1154
    %vm1159 = vcmask 523264
    %1160 = vst.msk [vmem:[#allocation2 + $0x8] sm:$0xff] %vm1159, %v1156
    // Predicated region
    $region26: #{tpu_custom_call.1} parent=1 // pred_check
      _
    $region27: #{tpu_custom_call.1} parent=1 // pred_check_branch
      %1162 = sbr.rel (0) target = $region29
    $region28: #{tpu_custom_call.1} parent=1 // pred_region
      %s1164 = ssub.s32 256, 256
      %1165 = vsyncadd [#allocation3], %s1164
      %s1167 = sshll.u32 [#allocation2], 4
      %s1168 = int_to_ptr.vmem [resolvable:$true] %s1167
      %1170 = dma.vmem_to_hbm [thread:$0]  %s1168, 256, %s6, [#allocation3]
    $region29: #{tpu_custom_call.1} parent=1 // pred_fallthru
      _
    // Predicated region
    $region30: #{tpu_custom_call.1} parent=1 // pred_check
      _
    $region31: #{tpu_custom_call.1} parent=1 // pred_check_branch
      %1172 = sbr.rel (0) target = $region33
    $region32: #{tpu_custom_call.1} parent=1 // pred_region
      %1173 = dma.done [#allocation3], 256
    $region33: #{tpu_custom_call.1} parent=1 // pred_fallthru
      _
    %1174 = vsyncpa [#allocation3], 1

</llo_original>
